<compile_context>
chip_gen: v7x
topology: tpu7x:2x2x1
jax: 0.10.0
libtpu: 0.0.40
codegen_flags: <defaults>
</compile_context>

<pallas_src>
import functools

import numpy as np

import jax
import jax.numpy as jnp
from jax.experimental import pallas as pl
from jax.experimental.pallas import tpu as pltpu


def _round_up(n, m):
    return ((n + m - 1) // m) * m


def _cdiv(a, b):
    return -(-a // b)


def _leaky_relu(x, negative_slope=0.01):
    # F.leaky_relu_ default negative_slope = 0.01
    return jnp.where(x >= 0, x, negative_slope * x)


def _dense_decoder_kernel(x_ref, hw_ref, hb_ref, wfc_ref, bfc_ref, out_ref, h_ref,
                          *, padded_dims, col_offsets, hidden_every_step):
    """Computes one (batch_tile, n_tile) block of the flat output.

    x_ref   : (tb, latent)            f32
    hw_ref  : (max_in, total_cols)    bf16  packed hidden weights, (in, out), 128-padded
    hb_ref  : (1, total_cols)         f32   packed hidden biases, 128-padded
    wfc_ref : (node_pad, tn)          bf16  fc weight column slice, (in, out)
    bfc_ref : (1, tn)                 f32
    out_ref : (tb, tn)
    h_ref   : (tb, node_pad)          bf16  VMEM scratch: hidden activations
    """

    def compute_hidden():
        h = x_ref[...].astype(jnp.bfloat16)           # bf16 MXU operand
        for (in_p, out_p), off in zip(padded_dims, col_offsets):
            w = hw_ref[0:in_p, off:off + out_p]       # 128-aligned, 128-wide slab
            b = hb_ref[0:1, off:off + out_p]          # f32
            y = jnp.dot(h, w, preferred_element_type=jnp.float32) + b
            h = _leaky_relu(y).astype(jnp.bfloat16)   # f32 VPU, carry bf16
            # TODO(synk): self.activations_total += act_reg_func(x) is a
            # training-time side effect (default contribution 0); it is not
            # part of the returned tensor so it is not computed here.
        h_ref[...] = h

    if hidden_every_step:
        compute_hidden()
    else:
        # Hidden stack only once per batch tile; reused for every fc-column tile.
        pl.when(pl.program_id(1) == 0)(compute_hidden)

    y = jnp.dot(h_ref[...], wfc_ref[...], preferred_element_type=jnp.float32) + bfc_ref[...]
    out_ref[...] = jax.nn.sigmoid(y).astype(out_ref.dtype)   # f32 EUP


def prepare_dense_decoder_params(dense_params, fc_params, latent):
    """ONE-TIME conversion of PyTorch-layout params (W: (out,in) f32, b: (out,))
    into the kernel layout: pre-transposed, bf16 MXU operands, 128-padded packed
    slabs.  Zero padding keeps the math bit-identical (leaky_relu(0)=0)."""
    layer_dims = [(int(w.shape[1]), int(w.shape[0])) for w, _ in dense_params]

    padded_dims = []
    col_offsets = []
    off = 0
    prev_out_p = latent                      # first layer's K is the raw latent width
    for in_f, out_f in layer_dims:
        in_p = prev_out_p                    # rows used from the slab for this layer
        out_p = _round_up(out_f, 128)        # run at 128-padded output width
        padded_dims.append((in_p, out_p))
        col_offsets.append(off)
        off += out_p
        prev_out_p = out_p
    total_cols = max(off, 128)
    max_in = _round_up(max([ip for ip, _ in padded_dims] + [16]), 16)

    hw = jnp.zeros((max_in, total_cols), jnp.float32)
    hb = jnp.zeros((1, total_cols), jnp.float32)
    for (w, b), (in_f, out_f), c0 in zip(dense_params, layer_dims, col_offsets):
        hw = hw.at[:in_f, c0:c0 + out_f].set(jnp.asarray(w, jnp.float32).T)
        hb = hb.at[:, c0:c0 + out_f].set(jnp.asarray(b, jnp.float32).reshape(1, -1))

    node_pad = prev_out_p                    # padded fc input width (= last out_p)
    w_fc, b_fc = fc_params
    node = int(w_fc.shape[1])
    flat = int(w_fc.shape[0])
    wfc = jnp.zeros((node_pad, flat), jnp.float32)
    wfc = wfc.at[:node, :].set(jnp.asarray(w_fc, jnp.float32).T)

    return {
        "hw": hw.astype(jnp.bfloat16),
        "hb": hb,
        "wfc": wfc.astype(jnp.bfloat16),     # (node_pad, flat), zero-padded rows
        "bfc": jnp.asarray(b_fc, jnp.float32).reshape(1, -1),
        "padded_dims": tuple(padded_dims),
        "col_offsets": tuple(col_offsets),
        "node": node,
        "node_pad": node_pad,
        "latent": latent,
    }


def _tensorcores_per_chip():
    """Defensive TC-per-chip detection (2 on v7x, 1 on v5e/v6e)."""
    try:
        kind = jax.devices()[0].device_kind.lower()
        if "v7" in kind:
            return 2
    except Exception:
        pass
    return 1


def _pick_batch_tile(batch):
    """MXU-aware batch tile: whole batch when small, else an aligned divisor."""
    if batch <= 512:
        return batch
    for c in (512, 256, 128):
        if batch % c == 0:
            return c
    return 512   # ragged last tile handled by cdiv grid + masked writeback


def _pick_n_tile(flat, node_pad, tile_b, out_bytes, resident_bytes,
                 budget=12 << 20):
    """Largest fc-column tile that fits a conservative VMEM budget.
    Prefers a single full-width tile (no recomputation, no extra grid step)."""
    def cost(tn):
        return (resident_bytes
                + 2 * node_pad * tn * 2        # wfc tile, double-buffered bf16
                + 2 * tn * 4                   # bfc tile, double-buffered f32
                + 2 * tile_b * tn * out_bytes  # output tile, double-buffered
                + tile_b * node_pad * 2)       # hidden-activation scratch (bf16)

    if cost(flat) <= budget:
        return flat
    best = None
    tn = 128
    while tn <= flat:
        if flat % tn == 0 and cost(tn) <= budget:
            best = tn
        tn += 128
    return best if best is not None else 128


def dense_decoder_forward(x, packed, output_shape, out_dtype=jnp.float32):
    """x: (B, latent) f32. packed: output of prepare_dense_decoder_params.
    Returns (B, *output_shape) in out_dtype (f32 default; bf16 optional)."""
    batch, latent = x.shape
    assert latent == packed["latent"]
    flat = 1
    for d in output_shape:
        flat *= d
    node_pad = packed["node_pad"]
    assert packed["wfc"].shape == (node_pad, flat)

    tile_b = _pick_batch_tile(batch)
    b_tiles = _cdiv(batch, tile_b)
    out_bytes = np.dtype(out_dtype).itemsize
    resident = (packed["hw"].size * 2 + packed["hb"].size * 4
                + 2 * tile_b * latent * 4)
    tile_n = _pick_n_tile(flat, node_pad, tile_b, out_bytes, resident)
    n_tiles = _cdiv(flat, tile_n)

    cores = _tensorcores_per_chip()
    if b_tiles == 1 and n_tiles >= 2 and cores >= 2:
        # v7x tiny-batch fallback: shard fc-column tiles across both
        # TensorCores; each program recomputes the (cheap) hidden stack so it
        # is self-contained.
        semantics = ("parallel", "parallel")
        hidden_every_step = True
    else:
        # Default: batch tiles "parallel" (megacore), fc-column tiles inner
        # and sequential so the hidden MLP runs once per batch tile.
        semantics = ("parallel", "arbitrary")
        hidden_every_step = (n_tiles == 1)   # single step -> skip the guard

    kernel = functools.partial(
        _dense_decoder_kernel,
        padded_dims=packed["padded_dims"],
        col_offsets=packed["col_offsets"],
        hidden_every_step=hidden_every_step,
    )

    out_flat = pl.pallas_call(
        kernel,
        out_shape=jax.ShapeDtypeStruct((batch, flat), out_dtype),
        grid_spec=pltpu.PrefetchScalarGridSpec(
            num_scalar_prefetch=0,
            grid=(b_tiles, n_tiles),
            in_specs=[
                pl.BlockSpec((tile_b, latent), lambda b, j: (b, 0)),
                pl.BlockSpec(packed["hw"].shape, lambda b, j: (0, 0)),   # resident
                pl.BlockSpec(packed["hb"].shape, lambda b, j: (0, 0)),   # resident
                pl.BlockSpec((node_pad, tile_n), lambda b, j: (0, j)),
                pl.BlockSpec((1, tile_n), lambda b, j: (0, j)),
            ],
            out_specs=pl.BlockSpec((tile_b, tile_n), lambda b, j: (b, j)),
            scratch_shapes=[pltpu.VMEM((tile_b, node_pad), jnp.bfloat16)],
        ),
        compiler_params=pltpu.CompilerParams(dimension_semantics=semantics),
    )(x, packed["hw"], packed["hb"], packed["wfc"], packed["bfc"])

    return out_flat.reshape(batch, *output_shape)


def init_dense_decoder_params(key, latent_shape, output_shape, node_count=256):
    """Deterministic synthetic init matching nn.Linear shapes: W (out,in), b (out,)."""
    dense_params = []
    in_count = latent_shape
    while in_count < node_count:
        out_count = in_count * 2
        key, kw, kb = jax.random.split(key, 3)
        bound = 1.0 / float(in_count) ** 0.5
        w = jax.random.uniform(kw, (out_count, in_count), jnp.float32, -bound, bound)
        b = jax.random.uniform(kb, (out_count,), jnp.float32, -bound, bound)
        dense_params.append((w, b))
        in_count = out_count

    flat = 1
    for d in output_shape:
        flat *= d
    key, kw, kb = jax.random.split(key, 3)
    bound = 1.0 / float(node_count) ** 0.5
    w_fc = jax.random.uniform(kw, (flat, node_count), jnp.float32, -bound, bound)
    b_fc = jax.random.uniform(kb, (flat,), jnp.float32, -bound, bound)
    return dense_params, (w_fc, b_fc)


def _reference_forward_f32(x, dense_params, fc_params, output_shape):
    """Pure-JAX f32 reference mirroring the PyTorch forward."""
    h = x
    for w, b in dense_params:
        h = h @ w.T + b
        h = jnp.where(h >= 0, h, 0.01 * h)
    w_fc, b_fc = fc_params
    y = jax.nn.sigmoid(h @ w_fc.T + b_fc)
    return y.reshape(-1, *output_shape)


def _reference_forward_bf16(x, packed, output_shape):
    """Exact mirror of the kernel math (bf16 MXU operands, f32 accumulation,
    128-padded hidden widths)."""
    h = x.astype(jnp.bfloat16)
    for (in_p, out_p), off in zip(packed["padded_dims"], packed["col_offsets"]):
        w = packed["hw"][:in_p, off:off + out_p]
        b = packed["hb"][:, off:off + out_p]
        y = jnp.dot(h, w, preferred_element_type=jnp.float32) + b
        h = jnp.where(y >= 0, y, 0.01 * y).astype(jnp.bfloat16)
    y = jnp.dot(h, packed["wfc"], preferred_element_type=jnp.float32) + packed["bfc"]
    return jax.nn.sigmoid(y).reshape(-1, *output_shape)


if __name__ == "__main__":
    # latent=32, node_count=256 -> dense layers 32->64->128->256;
    # output_shape (4,16,16) -> fc 256 -> 1024 -> view to (B,4,16,16).
    latent_shape = 32
    output_shape = (4, 16, 16)
    node_count = 256
    batch = 2

    key = jax.random.PRNGKey(0)
    key, kx, kp = jax.random.split(key, 3)
    x = jax.random.normal(kx, (batch, latent_shape), jnp.float32)
    dense_params, fc_params = init_dense_decoder_params(
        kp, latent_shape, output_shape, node_count
    )

    # One-time param packing (pre-transpose, bf16 cast, 128-padded slab packing).
    packed = prepare_dense_decoder_params(dense_params, fc_params, latent_shape)

    out = dense_decoder_forward(x, packed, output_shape)
    out = jax.block_until_ready(out)
    assert out.shape == (batch, *output_shape), out.shape

    # Tight check against an exact mirror of the kernel's bf16/f32 math.
    ref_exact = _reference_forward_bf16(x, packed, output_shape)
    err_exact = float(jnp.max(jnp.abs(out - ref_exact)))
    assert err_exact < 1e-4, err_exact

    # Looser check against full-f32 PyTorch semantics (bf16 weights -> ~1e-3 noise).
    ref_f32 = _reference_forward_f32(x, dense_params, fc_params, output_shape)
    err_f32 = float(jnp.max(jnp.abs(out - ref_f32)))
    assert err_f32 < 2e-2, err_f32

    print("KERNEL_OK")
</pallas_src>

<mosaic_0001>
module attributes {stable_mosaic.version = 11 : i64} {
  func.func @_dense_decoder_kernel(%arg0: i32, %arg1: i32, %arg2: memref<2x32xf32, #tpu.memory_space<vmem>>, %arg3: memref<128x512xbf16, #tpu.memory_space<vmem>>, %arg4: memref<1x512xf32, #tpu.memory_space<vmem>>, %arg5: memref<256x1024xbf16, #tpu.memory_space<vmem>>, %arg6: memref<1x1024xf32, #tpu.memory_space<vmem>>, %arg7: memref<2x1024xf32, #tpu.memory_space<vmem>>, %arg8: memref<2x256xbf16, #tpu.memory_space<vmem>>) attributes {dimension_semantics = [#tpu.dimension_semantics<parallel>, #tpu.dimension_semantics<arbitrary>], iteration_bounds = array<i64: 1, 1>, scalar_prefetch = 0 : i64, scratch_operands = 1 : i64, tpu.core_type = #tpu.core_type<tc>, window_params = [{transform_indices = @transform_0, window_bounds = array<i64: 2, 32>}, {pipeline_mode = #tpu.pipeline_mode<synchronous>, transform_indices = @transform_1, window_bounds = array<i64: 128, 512>}, {pipeline_mode = #tpu.pipeline_mode<synchronous>, transform_indices = @transform_2, window_bounds = array<i64: 1, 512>}, {transform_indices = @transform_3, window_bounds = array<i64: 256, 1024>}, {transform_indices = @transform_4, window_bounds = array<i64: 1, 1024>}, {transform_indices = @transform_5, window_bounds = array<i64: 2, 1024>}]} {
    %c0 = arith.constant 0 : index
    %c0_0 = arith.constant 0 : index
    %0 = vector.load %arg2[%c0, %c0_0] : memref<2x32xf32, #tpu.memory_space<vmem>>, vector<2x32xf32>
    %1 = arith.truncf %0 : vector<2x32xf32> to vector<2x32xbf16>
    %c0_1 = arith.constant 0 : index
    %c0_2 = arith.constant 0 : index
    %2 = vector.load %arg3[%c0_1, %c0_2] : memref<128x512xbf16, #tpu.memory_space<vmem>>, vector<32x128xbf16>
    %c0_3 = arith.constant 0 : index
    %c0_4 = arith.constant 0 : index
    %3 = vector.load %arg4[%c0_3, %c0_4] : memref<1x512xf32, #tpu.memory_space<vmem>>, vector<1x128xf32>
    %cst = arith.constant dense<0.000000e+00> : vector<2x128xf32>
    %4 = tpu.matmul %1, %2, %cst {dimension_numbers = #tpu.dot_dimension_numbers<[1], [0], [0], [1], [0, 0, 1, 1], [], []>} : vector<2x32xbf16>, vector<32x128xbf16>, vector<2x128xf32> -> vector<2x128xf32>
    %5 = vector.broadcast %3 : vector<1x128xf32> to vector<2x128xf32>
    %6 = arith.addf %4, %5 : vector<2x128xf32>
    %cst_5 = arith.constant 0.000000e+00 : f32
    %7 = vector.broadcast %cst_5 : f32 to vector<2x128xf32>
    %8 = arith.cmpf oge, %6, %7 : vector<2x128xf32>
    %cst_6 = arith.constant 0.00999999977 : f32
    %9 = vector.broadcast %cst_6 : f32 to vector<2x128xf32>
    %10 = arith.mulf %9, %6 : vector<2x128xf32>
    %11 = arith.select %8, %6, %10 : vector<2x128xi1>, vector<2x128xf32>
    %12 = arith.truncf %11 : vector<2x128xf32> to vector<2x128xbf16>
    %c0_7 = arith.constant 0 : index
    %c128 = arith.constant 128 : index
    %13 = vector.load %arg3[%c0_7, %c128] : memref<128x512xbf16, #tpu.memory_space<vmem>>, vector<128x128xbf16>
    %c0_8 = arith.constant 0 : index
    %c128_9 = arith.constant 128 : index
    %14 = vector.load %arg4[%c0_8, %c128_9] : memref<1x512xf32, #tpu.memory_space<vmem>>, vector<1x128xf32>
    %cst_10 = arith.constant dense<0.000000e+00> : vector<2x128xf32>
    %15 = tpu.matmul %12, %13, %cst_10 {dimension_numbers = #tpu.dot_dimension_numbers<[1], [0], [0], [1], [0, 0, 1, 1], [], []>} : vector<2x128xbf16>, vector<128x128xbf16>, vector<2x128xf32> -> vector<2x128xf32>
    %16 = vector.broadcast %14 : vector<1x128xf32> to vector<2x128xf32>
    %17 = arith.addf %15, %16 : vector<2x128xf32>
    %cst_11 = arith.constant 0.000000e+00 : f32
    %18 = vector.broadcast %cst_11 : f32 to vector<2x128xf32>
    %19 = arith.cmpf oge, %17, %18 : vector<2x128xf32>
    %cst_12 = arith.constant 0.00999999977 : f32
    %20 = vector.broadcast %cst_12 : f32 to vector<2x128xf32>
    %21 = arith.mulf %20, %17 : vector<2x128xf32>
    %22 = arith.select %19, %17, %21 : vector<2x128xi1>, vector<2x128xf32>
    %23 = arith.truncf %22 : vector<2x128xf32> to vector<2x128xbf16>
    %c0_13 = arith.constant 0 : index
    %c256 = arith.constant 256 : index
    %24 = vector.load %arg3[%c0_13, %c256] : memref<128x512xbf16, #tpu.memory_space<vmem>>, vector<128x256xbf16>
    %c0_14 = arith.constant 0 : index
    %c256_15 = arith.constant 256 : index
    %25 = vector.load %arg4[%c0_14, %c256_15] : memref<1x512xf32, #tpu.memory_space<vmem>>, vector<1x256xf32>
    %cst_16 = arith.constant dense<0.000000e+00> : vector<2x256xf32>
    %26 = tpu.matmul %23, %24, %cst_16 {dimension_numbers = #tpu.dot_dimension_numbers<[1], [0], [0], [1], [0, 0, 1, 1], [], []>} : vector<2x128xbf16>, vector<128x256xbf16>, vector<2x256xf32> -> vector<2x256xf32>
    %27 = vector.broadcast %25 : vector<1x256xf32> to vector<2x256xf32>
    %28 = arith.addf %26, %27 : vector<2x256xf32>
    %cst_17 = arith.constant 0.000000e+00 : f32
    %29 = vector.broadcast %cst_17 : f32 to vector<2x256xf32>
    %30 = arith.cmpf oge, %28, %29 : vector<2x256xf32>
    %cst_18 = arith.constant 0.00999999977 : f32
    %31 = vector.broadcast %cst_18 : f32 to vector<2x256xf32>
    %32 = arith.mulf %31, %28 : vector<2x256xf32>
    %33 = arith.select %30, %28, %32 : vector<2x256xi1>, vector<2x256xf32>
    %34 = arith.truncf %33 : vector<2x256xf32> to vector<2x256xbf16>
    %c0_19 = arith.constant 0 : index
    %c0_20 = arith.constant 0 : index
    %35 = vector.load %arg8[%c0_19, %c0_20] : memref<2x256xbf16, #tpu.memory_space<vmem>>, vector<2x256xbf16>
    tpu.vector_store %arg8[%c0_19, %c0_20], %34 {strides = array<i32>} : memref<2x256xbf16, #tpu.memory_space<vmem>>, vector<2x256xbf16>,
    %c0_21 = arith.constant 0 : index
    %c0_22 = arith.constant 0 : index
    %36 = vector.load %arg8[%c0_21, %c0_22] : memref<2x256xbf16, #tpu.memory_space<vmem>>, vector<2x256xbf16>
    %c0_23 = arith.constant 0 : index
    %c0_24 = arith.constant 0 : index
    %37 = vector.load %arg5[%c0_23, %c0_24] : memref<256x1024xbf16, #tpu.memory_space<vmem>>, vector<256x1024xbf16>
    %cst_25 = arith.constant dense<0.000000e+00> : vector<2x1024xf32>
    %38 = tpu.matmul %36, %37, %cst_25 {dimension_numbers = #tpu.dot_dimension_numbers<[1], [0], [0], [1], [0, 0, 1, 1], [], []>} : vector<2x256xbf16>, vector<256x1024xbf16>, vector<2x1024xf32> -> vector<2x1024xf32>
    %c0_26 = arith.constant 0 : index
    %c0_27 = arith.constant 0 : index
    %39 = vector.load %arg6[%c0_26, %c0_27] : memref<1x1024xf32, #tpu.memory_space<vmem>>, vector<1x1024xf32>
    %40 = vector.broadcast %39 : vector<1x1024xf32> to vector<2x1024xf32>
    %41 = arith.addf %38, %40 : vector<2x1024xf32>
    %42 = arith.negf %41 : vector<2x1024xf32>
    %43 = math.exp %42 : vector<2x1024xf32>
    %cst_28 = arith.constant 1.000000e+00 : f32
    %44 = vector.broadcast %cst_28 : f32 to vector<2x1024xf32>
    %45 = arith.addf %44, %43 : vector<2x1024xf32>
    %46 = arith.divf %44, %45 : vector<2x1024xf32>
    %c0_29 = arith.constant 0 : index
    %c0_30 = arith.constant 0 : index
    %47 = vector.load %arg7[%c0_29, %c0_30] : memref<2x1024xf32, #tpu.memory_space<vmem>>, vector<2x1024xf32>
    tpu.vector_store %arg7[%c0_29, %c0_30], %46 {strides = array<i32>} : memref<2x1024xf32, #tpu.memory_space<vmem>>, vector<2x1024xf32>,
    return
  }
  func.func @transform_0(%arg0: i32, %arg1: i32) -> (i32, i32) {
    %c0_i32 = arith.constant 0 : i32
    %c0_i32_0 = arith.constant 0 : i32
    return %arg0, %c0_i32 : i32, i32
  }
  func.func @transform_1(%arg0: i32, %arg1: i32) -> (i32, i32) {
    %c0_i32 = arith.constant 0 : i32
    %c0_i32_0 = arith.constant 0 : i32
    %c0_i32_1 = arith.constant 0 : i32
    return %c0_i32, %c0_i32_0 : i32, i32
  }
  func.func @transform_2(%arg0: i32, %arg1: i32) -> (i32, i32) {
    %c0_i32 = arith.constant 0 : i32
    %c0_i32_0 = arith.constant 0 : i32
    %c0_i32_1 = arith.constant 0 : i32
    return %c0_i32, %c0_i32_0 : i32, i32
  }
  func.func @transform_3(%arg0: i32, %arg1: i32) -> (i32, i32) {
    %c0_i32 = arith.constant 0 : i32
    %c0_i32_0 = arith.constant 0 : i32
    return %c0_i32, %arg1 : i32, i32
  }
  func.func @transform_4(%arg0: i32, %arg1: i32) -> (i32, i32) {
    %c0_i32 = arith.constant 0 : i32
    %c0_i32_0 = arith.constant 0 : i32
    return %c0_i32, %arg1 : i32, i32
  }
  func.func @transform_5(%arg0: i32, %arg1: i32) -> (i32, i32) {
    %c0_i32 = arith.constant 0 : i32
    return %arg0, %arg1 : i32, i32
  }
}

</mosaic_0001>

<llo_original>
// kernel: tpu_custom_call.1
$region0: #{tpu_custom_call.1}
  #allocation0 [shape = 'u32[]', space=smem, size = 0x4, offset = 0x4, fixed_abs, tag = 'smem constant byte address 0x4 - core index']
  #allocation1 [shape = 'u32[144,128]{1,0:T(1,128)}', space=vmem, size = 0x12000, scoped, tag = 'internal scratch']
  #allocation2 [shape = 'bf16[2,256]{1,0:T(2,128)(2,1)}', space=vmem, size = 0x400, scoped, tag = 'scratch operand']
  %s0 = inlined_call_operand.hbm [shape: f32[2,32], index: 0, kind: input, shape index: {}]
  %s1 = inlined_call_operand.hbm [shape: bf16[128,512], index: 1, kind: input, shape index: {}]
  %s2 = inlined_call_operand.vmem [shape: f32[1,512], index: 2, kind: input, shape index: {}]
  %s3 = inlined_call_operand.hbm [shape: bf16[256,1024], index: 3, kind: input, shape index: {}]
  %s4 = inlined_call_operand.vmem [shape: f32[1,1024], index: 4, kind: input, shape index: {}]
  %s5 = inlined_call_operand.hbm [shape: f32[2,1024], index: 5, kind: output, shape index: {}]
  %s6 = sld [smem:[#allocation0]]
  $region42: #{tpu_custom_call.1} parent=0
    _
  %s8 = ssub.s32 1, %s6
  %s9 = scalar_select 0, %s8, %s6
  $region1: #{tpu_custom_call.1} parent=0
    #allocation3 [shape = 'u8[1024]{0}', space=vmem, size = 0x400, scoped, tag = 'input window, operand 0, single buffered']
    #allocation4 [shape = 's32[1]{0}', space=sflag, size = 0x4, scoped, tag = 'scoped memory for tpu_custom_call.1']
    #allocation5 [shape = 's32[1]{0}', space=sflag, size = 0x4, scoped, tag = 'scoped memory for tpu_custom_call.1']
    #allocation6 [shape = 'u8[131072]{0}', space=vmem, size = 0x20000, scoped, tag = 'input window, operand 1, single buffered']
    #allocation7 [shape = 's32[1]{0}', space=sflag, size = 0x4, scoped, tag = 'scoped memory for tpu_custom_call.1']
    #allocation8 [shape = 'u8[524288]{0}', space=vmem, size = 0x80000, scoped, tag = 'input window, operand 3, single buffered']
    #allocation9 [shape = 'u8[8192]{0}', space=vmem, size = 0x2000, scoped, tag = 'output window, operand 0, single buffered']
    %10 = vsyncpa [#allocation4], 0
    %11 = vsyncpa [#allocation7], 0
    %12 = vsyncpa [#allocation5], 0
    // Predicated region
    $region2: #{tpu_custom_call.1} parent=1 // pred_check
      _
    $region3: #{tpu_custom_call.1} parent=1 // pred_check_branch
      %14 = sbr.rel (0) target = $region5
    $region4: #{tpu_custom_call.1} parent=1 // pred_region
      %s16 = ssub.s32 32, 32
      %17 = vsyncadd [#allocation4], %s16
      %s19 = sshll.u32 [#allocation3], 4
      %s20 = int_to_ptr.vmem [resolvable:$true] %s19
      %22 = dma.hbm_to_vmem [thread:$0]  %s0, 32, %s20, [#allocation4]
    $region5: #{tpu_custom_call.1} parent=1 // pred_fallthru
      _
    // Predicated region
    $region6: #{tpu_custom_call.1} parent=1 // pred_check
      _
    $region7: #{tpu_custom_call.1} parent=1 // pred_check_branch
      %24 = sbr.rel (0) target = $region9
    $region8: #{tpu_custom_call.1} parent=1 // pred_region
      %s26 = ssub.s32 4096, 4096
      %27 = vsyncadd [#allocation7], %s26
      %s28 = sshll.u32 [#allocation6], 4
      %s29 = int_to_ptr.vmem [resolvable:$true] %s28
      %34 = dma.hbm_to_vmem [thread:$0]  %s1, 4096, %s29, [#allocation7], 256, 256, 16
    $region9: #{tpu_custom_call.1} parent=1 // pred_fallthru
      _
    // Predicated region
    $region10: #{tpu_custom_call.1} parent=1 // pred_check
      _
    $region11: #{tpu_custom_call.1} parent=1 // pred_check_branch
      %36 = sbr.rel (0) target = $region13
    $region12: #{tpu_custom_call.1} parent=1 // pred_region
      _
    $region13: #{tpu_custom_call.1} parent=1 // pred_fallthru
      _
    // Predicated region
    $region14: #{tpu_custom_call.1} parent=1 // pred_check
      _
    $region15: #{tpu_custom_call.1} parent=1 // pred_check_branch
      %38 = sbr.rel (0) target = $region17
    $region16: #{tpu_custom_call.1} parent=1 // pred_region
      %s40 = ssub.s32 16384, 16384
      %41 = vsyncadd [#allocation7], %s40
      %s42 = sshll.u32 [#allocation8], 4
      %s43 = int_to_ptr.vmem [resolvable:$true] %s42
      %48 = dma.hbm_to_vmem [thread:$0]  %s3, 16384, %s43, [#allocation7], 512, 512, 32
    $region17: #{tpu_custom_call.1} parent=1 // pred_fallthru
      _
    // Predicated region
    $region18: #{tpu_custom_call.1} parent=1 // pred_check
      _
    $region19: #{tpu_custom_call.1} parent=1 // pred_check_branch
      %50 = sbr.rel (0) target = $region21
    $region20: #{tpu_custom_call.1} parent=1 // pred_region
      _
    $region21: #{tpu_custom_call.1} parent=1 // pred_fallthru
      _
    // Predicated region
    $region22: #{tpu_custom_call.1} parent=1 // pred_check
      _
    $region23: #{tpu_custom_call.1} parent=1 // pred_check_branch
      %52 = sbr.rel (0) target = $region25
    $region24: #{tpu_custom_call.1} parent=1 // pred_region
      %53 = dma.done [#allocation4], 32
    $region25: #{tpu_custom_call.1} parent=1 // pred_fallthru
      _
    // Predicated region
    $region26: #{tpu_custom_call.1} parent=1 // pred_check
      _
    $region27: #{tpu_custom_call.1} parent=1 // pred_check_branch
      %55 = sbr.rel (0) target = $region29
    $region28: #{tpu_custom_call.1} parent=1 // pred_region
      %56 = dma.done [#allocation7], 4096
    $region29: #{tpu_custom_call.1} parent=1 // pred_fallthru
      _
    // Predicated region
    $region30: #{tpu_custom_call.1} parent=1 // pred_check
      _
    $region31: #{tpu_custom_call.1} parent=1 // pred_check_branch
      %58 = sbr.rel (0) target = $region33
    $region32: #{tpu_custom_call.1} parent=1 // pred_region
      %59 = dma.done [#allocation7], 16384
    $region33: #{tpu_custom_call.1} parent=1 // pred_fallthru
      _
    %v61 = vld [vmem:[#allocation3] sm:$0x3]
    %v62 = vpack.c.bf16 %v61, %v61
    %v63 = vld [vmem:[#allocation6] sm:$0xf]
    %v64 = vld [vmem:[#allocation6 + $0x10] sm:$0xf]
    %v65 = vld [vmem:[#allocation6 + $0x20] sm:$0xf]
    %v66 = vld [vmem:[#allocation6 + $0x30] sm:$0xf]
    %v67 = vld [vmem:[%s2] sm:$0x1]
    %v69 = vlaneseq
    %v70 = vshrl.u32 %v69, 7
    %v71 = vsub.s32 0, %v70
    %v72 = vrot.slane %v67, %v71
    %v78 = vunpack.c.l.b16 %v63
    %v79 = vunpack.c.l.b16 %v64
    %v80 = vunpack.c.l.b16 %v65
    %v81 = vunpack.c.l.b16 %v66
    %v82 = vpack.c.b16 %v79, %v78
    %v83 = vpack.c.b16 %v81, %v80
    %vm86 = vcmask 261120
    %v88 = vsel %vm86, %v62, 0
    %90 = vmatprep.subr.bf16.mxu0 0
    %91 = vmatpush1.bf16.msra.mxu0 %v82
    %92 = vmatprep.subr.bf16.mxu0 0
    %93 = vmatpush1.bf16.msra.mxu0 %v83
    %94 = vmatprep.subr.bf16.mxu0 0
    %95 = vmatpush1.bf16.msra.mxu0 0
    %96 = vmatprep.subr.bf16.mxu0 0
    %97 = vmatpush1.bf16.msra.mxu0 0
    %98 = vmatprep.subr.bf16.mxu0 0
    %99 = vmatpush1.bf16.msra.mxu0 0
    %100 = vmatprep.subr.bf16.mxu0 0
    %101 = vmatpush1.bf16.msra.mxu0 0
    %102 = vmatprep.subr.bf16.mxu0 0
    %103 = vmatpush1.bf16.msra.mxu0 0
    %104 = vmatprep.subr.bf16.mxu0 0
    %105 = vmatpush1.bf16.msra.mxu0 0
    %106 = vmatprep.subr.bf16.mxu0 0
    %107 = vmatpush1.bf16.msra.mxu0 0
    %108 = vmatprep.subr.bf16.mxu0 0
    %109 = vmatpush1.bf16.msra.mxu0 0
    %110 = vmatprep.subr.bf16.mxu0 0
    %111 = vmatpush1.bf16.msra.mxu0 0
    %112 = vmatprep.subr.bf16.mxu0 0
    %113 = vmatpush1.bf16.msra.mxu0 0
    %114 = vmatprep.subr.bf16.mxu0 0
    %115 = vmatpush1.bf16.msra.mxu0 0
    %116 = vmatprep.subr.bf16.mxu0 0
    %117 = vmatpush1.bf16.msra.mxu0 0
    %118 = vmatprep.subr.bf16.mxu0 0
    %119 = vmatpush1.bf16.msra.mxu0 0
    %120 = vmatprep.subr.bf16.mxu0 0
    %121 = vmatpush1.bf16.msra.mxu0 0
    %122 = vmatprep.mubr.bf16.mxu0 0
    %123 = vmatmul.mubr.bf16.gmra.mrb[0].mxu0 %v88
    %v124 = vpop.f32.mrb[0].mxu0
    %v125 = vadd.f32 %v72, %v124
    %v126 = vpop.f32.mrb[0].mxu0
    %v127 = vpop.f32.mrb[0].mxu0
    %v128 = vpop.f32.mrb[0].mxu0
    %129 = vdwg.mxu0
    %vm130 = vcmp.ge.f32.partialorder %v125, 0.0
    %v131 = vmul.f32 %v125, 0.01
    %v132 = vsel %vm130, %v125, %v131
    %v133 = vpack.c.bf16 %v132, %v132
    %v134 = vld [vmem:[#allocation6 + $0x4] sm:$0xf]
    %v135 = vld [vmem:[#allocation6 + $0x14] sm:$0xf]
    %v136 = vld [vmem:[#allocation6 + $0x24] sm:$0xf]
    %v137 = vld [vmem:[#allocation6 + $0x34] sm:$0xf]
    %v138 = vld [vmem:[#allocation6 + $0x44] sm:$0xf]
    %v139 = vld [vmem:[#allocation6 + $0x54] sm:$0xf]
    %v140 = vld [vmem:[#allocation6 + $0x64] sm:$0xf]
    %v141 = vld [vmem:[#allocation6 + $0x74] sm:$0xf]
    %v142 = vld [vmem:[#allocation6 + $0x84] sm:$0xf]
    %v143 = vld [vmem:[#allocation6 + $0x94] sm:$0xf]
    %v144 = vld [vmem:[#allocation6 + $0xa4] sm:$0xf]
    %v145 = vld [vmem:[#allocation6 + $0xb4] sm:$0xf]
    %v146 = vld [vmem:[#allocation6 + $0xc4] sm:$0xf]
    %v147 = vld [vmem:[#allocation6 + $0xd4] sm:$0xf]
    %v148 = vld [vmem:[#allocation6 + $0xe4] sm:$0xf]
    %v149 = vld [vmem:[#allocation6 + $0xf4] sm:$0xf]
    %v150 = vld [vmem:[%s2 + $0x1] sm:$0x1]
    %v152 = vlaneseq
    %v153 = vshrl.u32 %v152, 7
    %v154 = vsub.s32 0, %v153
    %v155 = vrot.slane %v150, %v154
    %v173 = vunpack.c.l.b16 %v134
    %v174 = vunpack.c.l.b16 %v135
    %v175 = vunpack.c.l.b16 %v136
    %v176 = vunpack.c.l.b16 %v137
    %v177 = vunpack.c.l.b16 %v138
    %v178 = vunpack.c.l.b16 %v139
    %v179 = vunpack.c.l.b16 %v140
    %v180 = vunpack.c.l.b16 %v141
    %v181 = vunpack.c.l.b16 %v142
    %v182 = vunpack.c.l.b16 %v143
    %v183 = vunpack.c.l.b16 %v144
    %v184 = vunpack.c.l.b16 %v145
    %v185 = vunpack.c.l.b16 %v146
    %v186 = vunpack.c.l.b16 %v147
    %v187 = vunpack.c.l.b16 %v148
    %v188 = vunpack.c.l.b16 %v149
    %v189 = vpack.c.b16 %v174, %v173
    %v190 = vpack.c.b16 %v176, %v175
    %v191 = vpack.c.b16 %v178, %v177
    %v192 = vpack.c.b16 %v180, %v179
    %v193 = vpack.c.b16 %v182, %v181
    %v194 = vpack.c.b16 %v184, %v183
    %v195 = vpack.c.b16 %v186, %v185
    %v196 = vpack.c.b16 %v188, %v187
    %205 = vmatprep.subr.bf16.mxu0 0
    %206 = vmatpush1.bf16.msra.mxu0 %v189
    %207 = vmatprep.subr.bf16.mxu0 0
    %208 = vmatpush1.bf16.msra.mxu0 %v190
    %209 = vmatprep.subr.bf16.mxu0 0
    %210 = vmatpush1.bf16.msra.mxu0 %v191
    %211 = vmatprep.subr.bf16.mxu0 0
    %212 = vmatpush1.bf16.msra.mxu0 %v192
    %213 = vmatprep.subr.bf16.mxu0 0
    %214 = vmatpush1.bf16.msra.mxu0 %v193
    %215 = vmatprep.subr.bf16.mxu0 0
    %216 = vmatpush1.bf16.msra.mxu0 %v194
    %217 = vmatprep.subr.bf16.mxu0 0
    %218 = vmatpush1.bf16.msra.mxu0 %v195
    %219 = vmatprep.subr.bf16.mxu0 0
    %220 = vmatpush1.bf16.msra.mxu0 %v196
    %221 = vmatprep.subr.bf16.mxu0 0
    %222 = vmatpush1.bf16.msra.mxu0 0
    %223 = vmatprep.subr.bf16.mxu0 0
    %224 = vmatpush1.bf16.msra.mxu0 0
    %225 = vmatprep.subr.bf16.mxu0 0
    %226 = vmatpush1.bf16.msra.mxu0 0
    %227 = vmatprep.subr.bf16.mxu0 0
    %228 = vmatpush1.bf16.msra.mxu0 0
    %229 = vmatprep.subr.bf16.mxu0 0
    %230 = vmatpush1.bf16.msra.mxu0 0
    %231 = vmatprep.subr.bf16.mxu0 0
    %232 = vmatpush1.bf16.msra.mxu0 0
    %233 = vmatprep.subr.bf16.mxu0 0
    %234 = vmatpush1.bf16.msra.mxu0 0
    %235 = vmatprep.subr.bf16.mxu0 0
    %236 = vmatpush1.bf16.msra.mxu0 0
    %237 = vmatprep.mubr.bf16.mxu0 0
    %238 = vmatmul.mubr.bf16.gmra.mrb[0].mxu0 %v133
    %v239 = vpop.f32.mrb[0].mxu0
    %v240 = vadd.f32 %v155, %v239
    %v241 = vpop.f32.mrb[0].mxu0
    %v242 = vpop.f32.mrb[0].mxu0
    %v243 = vpop.f32.mrb[0].mxu0
    %244 = vdwg.mxu0
    %vm245 = vcmp.ge.f32.partialorder %v240, 0.0
    %v246 = vmul.f32 %v240, 0.01
    %v247 = vsel %vm245, %v240, %v246
    %v248 = vpack.c.bf16 %v247, %v247
    %v249 = vld [vmem:[#allocation6 + $0x8] sm:$0xff]
    %v250 = vld [vmem:[#allocation6 + $0x18] sm:$0xff]
    %v251 = vld [vmem:[#allocation6 + $0x28] sm:$0xff]
    %v252 = vld [vmem:[#allocation6 + $0x38] sm:$0xff]
    %v253 = vld [vmem:[#allocation6 + $0x48] sm:$0xff]
    %v254 = vld [vmem:[#allocation6 + $0x58] sm:$0xff]
    %v255 = vld [vmem:[#allocation6 + $0x68] sm:$0xff]
    %v256 = vld [vmem:[#allocation6 + $0x78] sm:$0xff]
    %v257 = vld [vmem:[#allocation6 + $0x88] sm:$0xff]
    %v258 = vld [vmem:[#allocation6 + $0x98] sm:$0xff]
    %v259 = vld [vmem:[#allocation6 + $0xa8] sm:$0xff]
    %v260 = vld [vmem:[#allocation6 + $0xb8] sm:$0xff]
    %v261 = vld [vmem:[#allocation6 + $0xc8] sm:$0xff]
    %v262 = vld [vmem:[#allocation6 + $0xd8] sm:$0xff]
    %v263 = vld [vmem:[#allocation6 + $0xe8] sm:$0xff]
    %v264 = vld [vmem:[#allocation6 + $0xf8] sm:$0xff]
    %v265 = vld [vmem:[%s2 + $0x2] sm:$0x3]
    %v267 = vlaneseq
    %v268 = vshrl.u32 %v267, 7
    %v269 = vsub.s32 0, %v268
    %v270 = vrot.slane %v265, %v269
    %v271 = vlaneseq
    %v272 = vshrl.u32 %v271, 7
    %v273 = vsub.s32 1, %v272
    %v274 = vrot.slane %v265, %v273
    %v293 = vunpack.c.l.b16 %v249
    %v294 = vunpack.c.h.b16 %v249
    %v295 = vunpack.c.l.b16 %v250
    %v296 = vunpack.c.h.b16 %v250
    %v297 = vunpack.c.l.b16 %v251
    %v298 = vunpack.c.h.b16 %v251
    %v299 = vunpack.c.l.b16 %v252
    %v300 = vunpack.c.h.b16 %v252
    %v301 = vunpack.c.l.b16 %v253
    %v302 = vunpack.c.h.b16 %v253
    %v303 = vunpack.c.l.b16 %v254
    %v304 = vunpack.c.h.b16 %v254
    %v305 = vunpack.c.l.b16 %v255
    %v306 = vunpack.c.h.b16 %v255
    %v307 = vunpack.c.l.b16 %v256
    %v308 = vunpack.c.h.b16 %v256
    %v309 = vunpack.c.l.b16 %v257
    %v310 = vunpack.c.h.b16 %v257
    %v311 = vunpack.c.l.b16 %v258
    %v312 = vunpack.c.h.b16 %v258
    %v313 = vunpack.c.l.b16 %v259
    %v314 = vunpack.c.h.b16 %v259
    %v315 = vunpack.c.l.b16 %v260
    %v316 = vunpack.c.h.b16 %v260
    %v317 = vunpack.c.l.b16 %v261
    %v318 = vunpack.c.h.b16 %v261
    %v319 = vunpack.c.l.b16 %v262
    %v320 = vunpack.c.h.b16 %v262
    %v321 = vunpack.c.l.b16 %v263
    %v322 = vunpack.c.h.b16 %v263
    %v323 = vunpack.c.l.b16 %v264
    %v324 = vunpack.c.h.b16 %v264
    %v325 = vpack.c.b16 %v295, %v293
    %v326 = vpack.c.b16 %v296, %v294
    %v327 = vpack.c.b16 %v299, %v297
    %v328 = vpack.c.b16 %v300, %v298
    %v329 = vpack.c.b16 %v303, %v301
    %v330 = vpack.c.b16 %v304, %v302
    %v331 = vpack.c.b16 %v307, %v305
    %v332 = vpack.c.b16 %v308, %v306
    %v333 = vpack.c.b16 %v311, %v309
    %v334 = vpack.c.b16 %v312, %v310
    %v335 = vpack.c.b16 %v315, %v313
    %v336 = vpack.c.b16 %v316, %v314
    %v337 = vpack.c.b16 %v319, %v317
    %v338 = vpack.c.b16 %v320, %v318
    %v339 = vpack.c.b16 %v323, %v321
    %v340 = vpack.c.b16 %v324, %v322
    %357 = vmatprep.subr.bf16.mxu0 %v326
    %358 = vmatpush1.bf16.msra.mxu0 %v325
    %359 = vmatprep.subr.bf16.mxu0 %v328
    %360 = vmatpush1.bf16.msra.mxu0 %v327
    %361 = vmatprep.subr.bf16.mxu0 %v330
    %362 = vmatpush1.bf16.msra.mxu0 %v329
    %363 = vmatprep.subr.bf16.mxu0 %v332
    %364 = vmatpush1.bf16.msra.mxu0 %v331
    %365 = vmatprep.subr.bf16.mxu0 %v334
    %366 = vmatpush1.bf16.msra.mxu0 %v333
    %367 = vmatprep.subr.bf16.mxu0 %v336
    %368 = vmatpush1.bf16.msra.mxu0 %v335
    %369 = vmatprep.subr.bf16.mxu0 %v338
    %370 = vmatpush1.bf16.msra.mxu0 %v337
    %371 = vmatprep.subr.bf16.mxu0 %v340
    %372 = vmatpush1.bf16.msra.mxu0 %v339
    %373 = vmatprep.subr.bf16.mxu0 0
    %374 = vmatpush1.bf16.msra.mxu0 0
    %375 = vmatprep.subr.bf16.mxu0 0
    %376 = vmatpush1.bf16.msra.mxu0 0
    %377 = vmatprep.subr.bf16.mxu0 0
    %378 = vmatpush1.bf16.msra.mxu0 0
    %379 = vmatprep.subr.bf16.mxu0 0
    %380 = vmatpush1.bf16.msra.mxu0 0
    %381 = vmatprep.subr.bf16.mxu0 0
    %382 = vmatpush1.bf16.msra.mxu0 0
    %383 = vmatprep.subr.bf16.mxu0 0
    %384 = vmatpush1.bf16.msra.mxu0 0
    %385 = vmatprep.subr.bf16.mxu0 0
    %386 = vmatpush1.bf16.msra.mxu0 0
    %387 = vmatprep.subr.bf16.mxu0 0
    %388 = vmatpush1.bf16.msra.mxu0 0
    %389 = vmatprep.mubr.bf16.mxu0 0
    %390 = vmatmul.mubr.bf16.gmra.mrb[0].mxu0 %v248
    %v391 = vpop.f32.mrb[0].mxu0
    %v392 = vadd.f32 %v270, %v391
    %v393 = vpop.f32.mrb[0].mxu0
    %v394 = vadd.f32 %v274, %v393
    %v395 = vpop.f32.mrb[0].mxu0
    %v396 = vpop.f32.mrb[0].mxu0
    %397 = vdwg.mxu0
    %vm398 = vcmp.ge.f32.partialorder %v392, 0.0
    %vm399 = vcmp.ge.f32.partialorder %v394, 0.0
    %v400 = vmul.f32 %v392, 0.01
    %v401 = vmul.f32 %v394, 0.01
    %v402 = vsel %vm398, %v392, %v400
    %v403 = vsel %vm399, %v394, %v401
    %v404 = vpack.c.bf16 %v402, %v402
    %v405 = vpack.c.bf16 %v403, %v403
    %v408 = vcombine.low %v404, %v405
    %v410 = vunpack.c.l.s4 1966171168
    %v411 = vunpack.c.0.s8 %v410
    %v412 = vlaneseq
    %v413 = vshrl.u32 %v412, 7
    %v414 = vsub.s32 %v411, %v413
    %v415 = vrot.slane %v408, %v414
    %v417 = vunpack.c.l.s4 1966171168
    %v418 = vunpack.c.0.s8 %v417
    %v419 = vlaneseq
    %v420 = vshrl.u32 %v419, 7
    %v421 = vsub.s32 %v418, %v420
    %v422 = vrot.slane %v415, %v421
    %424 = vst [vmem:[#allocation2] sm:$0x3] %v422
    %v425 = vld [vmem:[#allocation2] sm:$0x3]
    %v426 = vld [vmem:[#allocation8] sm:$0xff]
    %v427 = vld [vmem:[#allocation8 + $0x8] sm:$0xff]
    %v428 = vld [vmem:[#allocation8 + $0x10] sm:$0xff]
    %v429 = vld [vmem:[#allocation8 + $0x18] sm:$0xff]
    %v430 = vld [vmem:[#allocation8 + $0x20] sm:$0xff]
    %v431 = vld [vmem:[#allocation8 + $0x28] sm:$0xff]
    %v432 = vld [vmem:[#allocation8 + $0x30] sm:$0xff]
    %v433 = vld [vmem:[#allocation8 + $0x38] sm:$0xff]
    %v434 = vld [vmem:[#allocation8 + $0x40] sm:$0xff]
    %v435 = vld [vmem:[#allocation8 + $0x48] sm:$0xff]
    %v436 = vld [vmem:[#allocation8 + $0x50] sm:$0xff]
    %v437 = vld [vmem:[#allocation8 + $0x58] sm:$0xff]
    %v438 = vld [vmem:[#allocation8 + $0x60] sm:$0xff]
    %v439 = vld [vmem:[#allocation8 + $0x68] sm:$0xff]
    %v440 = vld [vmem:[#allocation8 + $0x70] sm:$0xff]
    %v441 = vld [vmem:[#allocation8 + $0x78] sm:$0xff]
    %v442 = vld [vmem:[#allocation8 + $0x80] sm:$0xff]
    %v443 = vld [vmem:[#allocation8 + $0x88] sm:$0xff]
    %v444 = vld [vmem:[#allocation8 + $0x90] sm:$0xff]
    %v445 = vld [vmem:[#allocation8 + $0x98] sm:$0xff]
    %v446 = vld [vmem:[#allocation8 + $0xa0] sm:$0xff]
    %v447 = vld [vmem:[#allocation8 + $0xa8] sm:$0xff]
    %v448 = vld [vmem:[#allocation8 + $0xb0] sm:$0xff]
    %v449 = vld [vmem:[#allocation8 + $0xb8] sm:$0xff]
    %v450 = vld [vmem:[#allocation8 + $0xc0] sm:$0xff]
    %v451 = vld [vmem:[#allocation8 + $0xc8] sm:$0xff]
    %v452 = vld [vmem:[#allocation8 + $0xd0] sm:$0xff]
    %v453 = vld [vmem:[#allocation8 + $0xd8] sm:$0xff]
    %v454 = vld [vmem:[#allocation8 + $0xe0] sm:$0xff]
    %v455 = vld [vmem:[#allocation8 + $0xe8] sm:$0xff]
    %v456 = vld [vmem:[#allocation8 + $0xf0] sm:$0xff]
    %v457 = vld [vmem:[#allocation8 + $0xf8] sm:$0xff]
    %v458 = vld [vmem:[#allocation8 + $0x100] sm:$0xff]
    %v459 = vld [vmem:[#allocation8 + $0x108] sm:$0xff]
    %v460 = vld [vmem:[#allocation8 + $0x110] sm:$0xff]
    %v461 = vld [vmem:[#allocation8 + $0x118] sm:$0xff]
    %v462 = vld [vmem:[#allocation8 + $0x120] sm:$0xff]
    %v463 = vld [vmem:[#allocation8 + $0x128] sm:$0xff]
    %v464 = vld [vmem:[#allocation8 + $0x130] sm:$0xff]
    %v465 = vld [vmem:[#allocation8 + $0x138] sm:$0xff]
    %v466 = vld [vmem:[#allocation8 + $0x140] sm:$0xff]
    %v467 = vld [vmem:[#allocation8 + $0x148] sm:$0xff]
    %v468 = vld [vmem:[#allocation8 + $0x150] sm:$0xff]
    %v469 = vld [vmem:[#allocation8 + $0x158] sm:$0xff]
    %v470 = vld [vmem:[#allocation8 + $0x160] sm:$0xff]
    %v471 = vld [vmem:[#allocation8 + $0x168] sm:$0xff]
    %v472 = vld [vmem:[#allocation8 + $0x170] sm:$0xff]
    %v473 = vld [vmem:[#allocation8 + $0x178] sm:$0xff]
    %v474 = vld [vmem:[#allocation8 + $0x180] sm:$0xff]
    %v475 = vld [vmem:[#allocation8 + $0x188] sm:$0xff]
    %v476 = vld [vmem:[#allocation8 + $0x190] sm:$0xff]
    %v477 = vld [vmem:[#allocation8 + $0x198] sm:$0xff]
    %v478 = vld [vmem:[#allocation8 + $0x1a0] sm:$0xff]
    %v479 = vld [vmem:[#allocation8 + $0x1a8] sm:$0xff]
    %v480 = vld [vmem:[#allocation8 + $0x1b0] sm:$0xff]
    %v481 = vld [vmem:[#allocation8 + $0x1b8] sm:$0xff]
    %v482 = vld [vmem:[#allocation8 + $0x1c0] sm:$0xff]
    %v483 = vld [vmem:[#allocation8 + $0x1c8] sm:$0xff]
    %v484 = vld [vmem:[#allocation8 + $0x1d0] sm:$0xff]
    %v485 = vld [vmem:[#allocation8 + $0x1d8] sm:$0xff]
    %v486 = vld [vmem:[#allocation8 + $0x1e0] sm:$0xff]
    %v487 = vld [vmem:[#allocation8 + $0x1e8] sm:$0xff]
    %v488 = vld [vmem:[#allocation8 + $0x1f0] sm:$0xff]
    %v489 = vld [vmem:[#allocation8 + $0x1f8] sm:$0xff]
    %v490 = vld [vmem:[#allocation8 + $0x200] sm:$0xff]
    %v491 = vld [vmem:[#allocation8 + $0x208] sm:$0xff]
    %v492 = vld [vmem:[#allocation8 + $0x210] sm:$0xff]
    %v493 = vld [vmem:[#allocation8 + $0x218] sm:$0xff]
    %v494 = vld [vmem:[#allocation8 + $0x220] sm:$0xff]
    %v495 = vld [vmem:[#allocation8 + $0x228] sm:$0xff]
    %v496 = vld [vmem:[#allocation8 + $0x230] sm:$0xff]
    %v497 = vld [vmem:[#allocation8 + $0x238] sm:$0xff]
    %v498 = vld [vmem:[#allocation8 + $0x240] sm:$0xff]
    %v499 = vld [vmem:[#allocation8 + $0x248] sm:$0xff]
    %v500 = vld [vmem:[#allocation8 + $0x250] sm:$0xff]
    %v501 = vld [vmem:[#allocation8 + $0x258] sm:$0xff]
    %v502 = vld [vmem:[#allocation8 + $0x260] sm:$0xff]
    %v503 = vld [vmem:[#allocation8 + $0x268] sm:$0xff]
    %v504 = vld [vmem:[#allocation8 + $0x270] sm:$0xff]
    %v505 = vld [vmem:[#allocation8 + $0x278] sm:$0xff]
    %v506 = vld [vmem:[#allocation8 + $0x280] sm:$0xff]
    %v507 = vld [vmem:[#allocation8 + $0x288] sm:$0xff]
    %v508 = vld [vmem:[#allocation8 + $0x290] sm:$0xff]
    %v509 = vld [vmem:[#allocation8 + $0x298] sm:$0xff]
    %v510 = vld [vmem:[#allocation8 + $0x2a0] sm:$0xff]
    %v511 = vld [vmem:[#allocation8 + $0x2a8] sm:$0xff]
    %v512 = vld [vmem:[#allocation8 + $0x2b0] sm:$0xff]
    %v513 = vld [vmem:[#allocation8 + $0x2b8] sm:$0xff]
    %v514 = vld [vmem:[#allocation8 + $0x2c0] sm:$0xff]
    %v515 = vld [vmem:[#allocation8 + $0x2c8] sm:$0xff]
    %v516 = vld [vmem:[#allocation8 + $0x2d0] sm:$0xff]
    %v517 = vld [vmem:[#allocation8 + $0x2d8] sm:$0xff]
    %v518 = vld [vmem:[#allocation8 + $0x2e0] sm:$0xff]
    %v519 = vld [vmem:[#allocation8 + $0x2e8] sm:$0xff]
    %v520 = vld [vmem:[#allocation8 + $0x2f0] sm:$0xff]
    %v521 = vld [vmem:[#allocation8 + $0x2f8] sm:$0xff]
    %v522 = vld [vmem:[#allocation8 + $0x300] sm:$0xff]
    %v523 = vld [vmem:[#allocation8 + $0x308] sm:$0xff]
    %v524 = vld [vmem:[#allocation8 + $0x310] sm:$0xff]
    %v525 = vld [vmem:[#allocation8 + $0x318] sm:$0xff]
    %v526 = vld [vmem:[#allocation8 + $0x320] sm:$0xff]
    %v527 = vld [vmem:[#allocation8 + $0x328] sm:$0xff]
    %v528 = vld [vmem:[#allocation8 + $0x330] sm:$0xff]
    %v529 = vld [vmem:[#allocation8 + $0x338] sm:$0xff]
    %v530 = vld [vmem:[#allocation8 + $0x340] sm:$0xff]
    %v531 = vld [vmem:[#allocation8 + $0x348] sm:$0xff]
    %v532 = vld [vmem:[#allocation8 + $0x350] sm:$0xff]
    %v533 = vld [vmem:[#allocation8 + $0x358] sm:$0xff]
    %v534 = vld [vmem:[#allocation8 + $0x360] sm:$0xff]
    %v535 = vld [vmem:[#allocation8 + $0x368] sm:$0xff]
    %v536 = vld [vmem:[#allocation8 + $0x370] sm:$0xff]
    %v537 = vld [vmem:[#allocation8 + $0x378] sm:$0xff]
    %v538 = vld [vmem:[#allocation8 + $0x380] sm:$0xff]
    %v539 = vld [vmem:[#allocation8 + $0x388] sm:$0xff]
    %v540 = vld [vmem:[#allocation8 + $0x390] sm:$0xff]
    %v541 = vld [vmem:[#allocation8 + $0x398] sm:$0xff]
    %v542 = vld [vmem:[#allocation8 + $0x3a0] sm:$0xff]
    %v543 = vld [vmem:[#allocation8 + $0x3a8] sm:$0xff]
    %v544 = vld [vmem:[#allocation8 + $0x3b0] sm:$0xff]
    %v545 = vld [vmem:[#allocation8 + $0x3b8] sm:$0xff]
    %v546 = vld [vmem:[#allocation8 + $0x3c0] sm:$0xff]
    %v547 = vld [vmem:[#allocation8 + $0x3c8] sm:$0xff]
    %v548 = vld [vmem:[#allocation8 + $0x3d0] sm:$0xff]
    %v549 = vld [vmem:[#allocation8 + $0x3d8] sm:$0xff]
    %v550 = vld [vmem:[#allocation8 + $0x3e0] sm:$0xff]
    %v551 = vld [vmem:[#allocation8 + $0x3e8] sm:$0xff]
    %v552 = vld [vmem:[#allocation8 + $0x3f0] sm:$0xff]
    %v553 = vld [vmem:[#allocation8 + $0x3f8] sm:$0xff]
    %v554 = vld [vmem:[%s4] sm:$0xff]
    %v556 = vlaneseq
    %v557 = vshrl.u32 %v556, 7
    %v558 = vsub.s32 0, %v557
    %v559 = vrot.slane %v554, %v558
    %v560 = vlaneseq
    %v561 = vshrl.u32 %v560, 7
    %v562 = vsub.s32 1, %v561
    %v563 = vrot.slane %v554, %v562
    %v564 = vlaneseq
    %v565 = vshrl.u32 %v564, 7
    %v566 = vsub.s32 2, %v565
    %v567 = vrot.slane %v554, %v566
    %v568 = vlaneseq
    %v569 = vshrl.u32 %v568, 7
    %v570 = vsub.s32 3, %v569
    %v571 = vrot.slane %v554, %v570
    %v572 = vlaneseq
    %v573 = vshrl.u32 %v572, 7
    %v574 = vsub.s32 4, %v573
    %v575 = vrot.slane %v554, %v574
    %v576 = vlaneseq
    %v577 = vshrl.u32 %v576, 7
    %v578 = vsub.s32 5, %v577
    %v579 = vrot.slane %v554, %v578
    %v580 = vlaneseq
    %v581 = vshrl.u32 %v580, 7
    %v582 = vsub.s32 6, %v581
    %v583 = vrot.slane %v554, %v582
    %v584 = vlaneseq
    %v585 = vshrl.u32 %v584, 7
    %v586 = vsub.s32 7, %v585
    %v587 = vrot.slane %v554, %v586
    %v598 = vunpack.c.l.s4 1966171168
    %v599 = vunpack.c.0.s8 %v598
    %v600 = vlaneseq
    %v601 = vshrl.u32 %v600, 7
    %v602 = vsub.s32 %v599, %v601
    %v603 = vrot.slane %v425, %v602
    %v604 = vcombine.high %v603, %v603
    %v606 = vunpack.c.l.s4 1966171168
    %v607 = vunpack.c.0.s8 %v606
    %v608 = vlaneseq
    %v609 = vshrl.u32 %v608, 7
    %v610 = vsub.s32 %v607, %v609
    %v611 = vrot.slane %v603, %v610
    %v613 = vunpack.c.l.s4 1966171168
    %v614 = vunpack.c.0.s8 %v613
    %v615 = vlaneseq
    %v616 = vshrl.u32 %v615, 7
    %v617 = vsub.s32 %v614, %v616
    %v618 = vrot.slane %v604, %v617
    %v749 = vunpack.c.l.b16 %v426
    %v750 = vunpack.c.h.b16 %v426
    %v751 = vunpack.c.l.b16 %v427
    %v752 = vunpack.c.h.b16 %v427
    %v753 = vunpack.c.l.b16 %v428
    %v754 = vunpack.c.h.b16 %v428
    %v755 = vunpack.c.l.b16 %v429
    %v756 = vunpack.c.h.b16 %v429
    %v757 = vunpack.c.l.b16 %v430
    %v758 = vunpack.c.h.b16 %v430
    %v759 = vunpack.c.l.b16 %v431
    %v760 = vunpack.c.h.b16 %v431
    %v761 = vunpack.c.l.b16 %v432
    %v762 = vunpack.c.h.b16 %v432
    %v763 = vunpack.c.l.b16 %v433
    %v764 = vunpack.c.h.b16 %v433
    %v765 = vunpack.c.l.b16 %v434
    %v766 = vunpack.c.h.b16 %v434
    %v767 = vunpack.c.l.b16 %v435
    %v768 = vunpack.c.h.b16 %v435
    %v769 = vunpack.c.l.b16 %v436
    %v770 = vunpack.c.h.b16 %v436
    %v771 = vunpack.c.l.b16 %v437
    %v772 = vunpack.c.h.b16 %v437
    %v773 = vunpack.c.l.b16 %v438
    %v774 = vunpack.c.h.b16 %v438
    %v775 = vunpack.c.l.b16 %v439
    %v776 = vunpack.c.h.b16 %v439
    %v777 = vunpack.c.l.b16 %v440
    %v778 = vunpack.c.h.b16 %v440
    %v779 = vunpack.c.l.b16 %v441
    %v780 = vunpack.c.h.b16 %v441
    %v781 = vunpack.c.l.b16 %v442
    %v782 = vunpack.c.h.b16 %v442
    %v783 = vunpack.c.l.b16 %v443
    %v784 = vunpack.c.h.b16 %v443
    %v785 = vunpack.c.l.b16 %v444
    %v786 = vunpack.c.h.b16 %v444
    %v787 = vunpack.c.l.b16 %v445
    %v788 = vunpack.c.h.b16 %v445
    %v789 = vunpack.c.l.b16 %v446
    %v790 = vunpack.c.h.b16 %v446
    %v791 = vunpack.c.l.b16 %v447
    %v792 = vunpack.c.h.b16 %v447
    %v793 = vunpack.c.l.b16 %v448
    %v794 = vunpack.c.h.b16 %v448
    %v795 = vunpack.c.l.b16 %v449
    %v796 = vunpack.c.h.b16 %v449
    %v797 = vunpack.c.l.b16 %v450
    %v798 = vunpack.c.h.b16 %v450
    %v799 = vunpack.c.l.b16 %v451
    %v800 = vunpack.c.h.b16 %v451
    %v801 = vunpack.c.l.b16 %v452
    %v802 = vunpack.c.h.b16 %v452
    %v803 = vunpack.c.l.b16 %v453
    %v804 = vunpack.c.h.b16 %v453
    %v805 = vunpack.c.l.b16 %v454
    %v806 = vunpack.c.h.b16 %v454
    %v807 = vunpack.c.l.b16 %v455
    %v808 = vunpack.c.h.b16 %v455
    %v809 = vunpack.c.l.b16 %v456
    %v810 = vunpack.c.h.b16 %v456
    %v811 = vunpack.c.l.b16 %v457
    %v812 = vunpack.c.h.b16 %v457
    %v813 = vunpack.c.l.b16 %v458
    %v814 = vunpack.c.h.b16 %v458
    %v815 = vunpack.c.l.b16 %v459
    %v816 = vunpack.c.h.b16 %v459
    %v817 = vunpack.c.l.b16 %v460
    %v818 = vunpack.c.h.b16 %v460
    %v819 = vunpack.c.l.b16 %v461
    %v820 = vunpack.c.h.b16 %v461
    %v821 = vunpack.c.l.b16 %v462
    %v822 = vunpack.c.h.b16 %v462
    %v823 = vunpack.c.l.b16 %v463
    %v824 = vunpack.c.h.b16 %v463
    %v825 = vunpack.c.l.b16 %v464
    %v826 = vunpack.c.h.b16 %v464
    %v827 = vunpack.c.l.b16 %v465
    %v828 = vunpack.c.h.b16 %v465
    %v829 = vunpack.c.l.b16 %v466
    %v830 = vunpack.c.h.b16 %v466
    %v831 = vunpack.c.l.b16 %v467
    %v832 = vunpack.c.h.b16 %v467
    %v833 = vunpack.c.l.b16 %v468
    %v834 = vunpack.c.h.b16 %v468
    %v835 = vunpack.c.l.b16 %v469
    %v836 = vunpack.c.h.b16 %v469
    %v837 = vunpack.c.l.b16 %v470
    %v838 = vunpack.c.h.b16 %v470
    %v839 = vunpack.c.l.b16 %v471
    %v840 = vunpack.c.h.b16 %v471
    %v841 = vunpack.c.l.b16 %v472
    %v842 = vunpack.c.h.b16 %v472
    %v843 = vunpack.c.l.b16 %v473
    %v844 = vunpack.c.h.b16 %v473
    %v845 = vunpack.c.l.b16 %v474
    %v846 = vunpack.c.h.b16 %v474
    %v847 = vunpack.c.l.b16 %v475
    %v848 = vunpack.c.h.b16 %v475
    %v849 = vunpack.c.l.b16 %v476
    %v850 = vunpack.c.h.b16 %v476
    %v851 = vunpack.c.l.b16 %v477
    %v852 = vunpack.c.h.b16 %v477
    %v853 = vunpack.c.l.b16 %v478
    %v854 = vunpack.c.h.b16 %v478
    %v855 = vunpack.c.l.b16 %v479
    %v856 = vunpack.c.h.b16 %v479
    %v857 = vunpack.c.l.b16 %v480
    %v858 = vunpack.c.h.b16 %v480
    %v859 = vunpack.c.l.b16 %v481
    %v860 = vunpack.c.h.b16 %v481
    %v861 = vunpack.c.l.b16 %v482
    %v862 = vunpack.c.h.b16 %v482
    %v863 = vunpack.c.l.b16 %v483
    %v864 = vunpack.c.h.b16 %v483
    %v865 = vunpack.c.l.b16 %v484
    %v866 = vunpack.c.h.b16 %v484
    %v867 = vunpack.c.l.b16 %v485
    %v868 = vunpack.c.h.b16 %v485
    %v869 = vunpack.c.l.b16 %v486
    %v870 = vunpack.c.h.b16 %v486
    %v871 = vunpack.c.l.b16 %v487
    %v872 = vunpack.c.h.b16 %v487
    %v873 = vunpack.c.l.b16 %v488
    %v874 = vunpack.c.h.b16 %v488
    %v875 = vunpack.c.l.b16 %v489
    %v876 = vunpack.c.h.b16 %v489
    %v877 = vunpack.c.l.b16 %v490
    %v878 = vunpack.c.h.b16 %v490
    %v879 = vunpack.c.l.b16 %v491
    %v880 = vunpack.c.h.b16 %v491
    %v881 = vunpack.c.l.b16 %v492
    %v882 = vunpack.c.h.b16 %v492
    %v883 = vunpack.c.l.b16 %v493
    %v884 = vunpack.c.h.b16 %v493
    %v885 = vunpack.c.l.b16 %v494
    %v886 = vunpack.c.h.b16 %v494
    %v887 = vunpack.c.l.b16 %v495
    %v888 = vunpack.c.h.b16 %v495
    %v889 = vunpack.c.l.b16 %v496
    %v890 = vunpack.c.h.b16 %v496
    %v891 = vunpack.c.l.b16 %v497
    %v892 = vunpack.c.h.b16 %v497
    %v893 = vunpack.c.l.b16 %v498
    %v894 = vunpack.c.h.b16 %v498
    %v895 = vunpack.c.l.b16 %v499
    %v896 = vunpack.c.h.b16 %v499
    %v897 = vunpack.c.l.b16 %v500
    %v898 = vunpack.c.h.b16 %v500
    %v899 = vunpack.c.l.b16 %v501
    %v900 = vunpack.c.h.b16 %v501
    %v901 = vunpack.c.l.b16 %v502
    %v902 = vunpack.c.h.b16 %v502
    %v903 = vunpack.c.l.b16 %v503
    %v904 = vunpack.c.h.b16 %v503
    %v905 = vunpack.c.l.b16 %v504
    %v906 = vunpack.c.h.b16 %v504
    %v907 = vunpack.c.l.b16 %v505
    %v908 = vunpack.c.h.b16 %v505
    %v909 = vunpack.c.l.b16 %v506
    %v910 = vunpack.c.h.b16 %v506
    %v911 = vunpack.c.l.b16 %v507
    %v912 = vunpack.c.h.b16 %v507
    %v913 = vunpack.c.l.b16 %v508
    %v914 = vunpack.c.h.b16 %v508
    %v915 = vunpack.c.l.b16 %v509
    %v916 = vunpack.c.h.b16 %v509
    %v917 = vunpack.c.l.b16 %v510
    %v918 = vunpack.c.h.b16 %v510
    %v919 = vunpack.c.l.b16 %v511
    %v920 = vunpack.c.h.b16 %v511
    %v921 = vunpack.c.l.b16 %v512
    %v922 = vunpack.c.h.b16 %v512
    %v923 = vunpack.c.l.b16 %v513
    %v924 = vunpack.c.h.b16 %v513
    %v925 = vunpack.c.l.b16 %v514
    %v926 = vunpack.c.h.b16 %v514
    %v927 = vunpack.c.l.b16 %v515
    %v928 = vunpack.c.h.b16 %v515
    %v929 = vunpack.c.l.b16 %v516
    %v930 = vunpack.c.h.b16 %v516
    %v931 = vunpack.c.l.b16 %v517
    %v932 = vunpack.c.h.b16 %v517
    %v933 = vunpack.c.l.b16 %v518
    %v934 = vunpack.c.h.b16 %v518
    %v935 = vunpack.c.l.b16 %v519
    %v936 = vunpack.c.h.b16 %v519
    %v937 = vunpack.c.l.b16 %v520
    %v938 = vunpack.c.h.b16 %v520
    %v939 = vunpack.c.l.b16 %v521
    %v940 = vunpack.c.h.b16 %v521
    %v941 = vunpack.c.l.b16 %v522
    %v942 = vunpack.c.h.b16 %v522
    %v943 = vunpack.c.l.b16 %v523
    %v944 = vunpack.c.h.b16 %v523
    %v945 = vunpack.c.l.b16 %v524
    %v946 = vunpack.c.h.b16 %v524
    %v947 = vunpack.c.l.b16 %v525
    %v948 = vunpack.c.h.b16 %v525
    %v949 = vunpack.c.l.b16 %v526
    %v950 = vunpack.c.h.b16 %v526
    %v951 = vunpack.c.l.b16 %v527
    %v952 = vunpack.c.h.b16 %v527
    %v953 = vunpack.c.l.b16 %v528
    %v954 = vunpack.c.h.b16 %v528
    %v955 = vunpack.c.l.b16 %v529
    %v956 = vunpack.c.h.b16 %v529
    %v957 = vunpack.c.l.b16 %v530
    %v958 = vunpack.c.h.b16 %v530
    %v959 = vunpack.c.l.b16 %v531
    %v960 = vunpack.c.h.b16 %v531
    %v961 = vunpack.c.l.b16 %v532
    %v962 = vunpack.c.h.b16 %v532
    %v963 = vunpack.c.l.b16 %v533
    %v964 = vunpack.c.h.b16 %v533
    %v965 = vunpack.c.l.b16 %v534
    %v966 = vunpack.c.h.b16 %v534
    %v967 = vunpack.c.l.b16 %v535
    %v968 = vunpack.c.h.b16 %v535
    %v969 = vunpack.c.l.b16 %v536
    %v970 = vunpack.c.h.b16 %v536
    %v971 = vunpack.c.l.b16 %v537
    %v972 = vunpack.c.h.b16 %v537
    %v973 = vunpack.c.l.b16 %v538
    %v974 = vunpack.c.h.b16 %v538
    %v975 = vunpack.c.l.b16 %v539
    %v976 = vunpack.c.h.b16 %v539
    %v977 = vunpack.c.l.b16 %v540
    %v978 = vunpack.c.h.b16 %v540
    %v979 = vunpack.c.l.b16 %v541
    %v980 = vunpack.c.h.b16 %v541
    %v981 = vunpack.c.l.b16 %v542
    %v982 = vunpack.c.h.b16 %v542
    %v983 = vunpack.c.l.b16 %v543
    %v984 = vunpack.c.h.b16 %v543
    %v985 = vunpack.c.l.b16 %v544
    %v986 = vunpack.c.h.b16 %v544
    %v987 = vunpack.c.l.b16 %v545
    %v988 = vunpack.c.h.b16 %v545
    %v989 = vunpack.c.l.b16 %v546
    %v990 = vunpack.c.h.b16 %v546
    %v991 = vunpack.c.l.b16 %v547
    %v992 = vunpack.c.h.b16 %v547
    %v993 = vunpack.c.l.b16 %v548
    %v994 = vunpack.c.h.b16 %v548
    %v995 = vunpack.c.l.b16 %v549
    %v996 = vunpack.c.h.b16 %v549
    %v997 = vunpack.c.l.b16 %v550
    %v998 = vunpack.c.h.b16 %v550
    %v999 = vunpack.c.l.b16 %v551
    %v1000 = vunpack.c.h.b16 %v551
    %v1001 = vunpack.c.l.b16 %v552
    %v1002 = vunpack.c.h.b16 %v552
    %v1003 = vunpack.c.l.b16 %v553
    %v1004 = vunpack.c.h.b16 %v553
    %v1005 = vpack.c.b16 %v757, %v749
    %v1006 = vpack.c.b16 %v758, %v750
    %v1007 = vpack.c.b16 %v759, %v751
    %v1008 = vpack.c.b16 %v760, %v752
    %v1009 = vpack.c.b16 %v761, %v753
    %v1010 = vpack.c.b16 %v762, %v754
    %v1011 = vpack.c.b16 %v763, %v755
    %v1012 = vpack.c.b16 %v764, %v756
    %v1013 = vpack.c.b16 %v773, %v765
    %v1014 = vpack.c.b16 %v774, %v766
    %v1015 = vpack.c.b16 %v775, %v767
    %v1016 = vpack.c.b16 %v776, %v768
    %v1017 = vpack.c.b16 %v777, %v769
    %v1018 = vpack.c.b16 %v778, %v770
    %v1019 = vpack.c.b16 %v779, %v771
    %v1020 = vpack.c.b16 %v780, %v772
    %v1021 = vpack.c.b16 %v789, %v781
    %v1022 = vpack.c.b16 %v790, %v782
    %v1023 = vpack.c.b16 %v791, %v783
    %v1024 = vpack.c.b16 %v792, %v784
    %v1025 = vpack.c.b16 %v793, %v785
    %v1026 = vpack.c.b16 %v794, %v786
    %v1027 = vpack.c.b16 %v795, %v787
    %v1028 = vpack.c.b16 %v796, %v788
    %v1029 = vpack.c.b16 %v805, %v797
    %v1030 = vpack.c.b16 %v806, %v798
    %v1031 = vpack.c.b16 %v807, %v799
    %v1032 = vpack.c.b16 %v808, %v800
    %v1033 = vpack.c.b16 %v809, %v801
    %v1034 = vpack.c.b16 %v810, %v802
    %v1035 = vpack.c.b16 %v811, %v803
    %v1036 = vpack.c.b16 %v812, %v804
    %v1037 = vpack.c.b16 %v821, %v813
    %v1038 = vpack.c.b16 %v822, %v814
    %v1039 = vpack.c.b16 %v823, %v815
    %v1040 = vpack.c.b16 %v824, %v816
    %v1041 = vpack.c.b16 %v825, %v817
    %v1042 = vpack.c.b16 %v826, %v818
    %v1043 = vpack.c.b16 %v827, %v819
    %v1044 = vpack.c.b16 %v828, %v820
    %v1045 = vpack.c.b16 %v837, %v829
    %v1046 = vpack.c.b16 %v838, %v830
    %v1047 = vpack.c.b16 %v839, %v831
    %v1048 = vpack.c.b16 %v840, %v832
    %v1049 = vpack.c.b16 %v841, %v833
    %v1050 = vpack.c.b16 %v842, %v834
    %v1051 = vpack.c.b16 %v843, %v835
    %v1052 = vpack.c.b16 %v844, %v836
    %v1053 = vpack.c.b16 %v853, %v845
    %v1054 = vpack.c.b16 %v854, %v846
    %v1055 = vpack.c.b16 %v855, %v847
    %v1056 = vpack.c.b16 %v856, %v848
    %v1057 = vpack.c.b16 %v857, %v849
    %v1058 = vpack.c.b16 %v858, %v850
    %v1059 = vpack.c.b16 %v859, %v851
    %v1060 = vpack.c.b16 %v860, %v852
    %v1061 = vpack.c.b16 %v869, %v861
    %v1062 = vpack.c.b16 %v870, %v862
    %v1063 = vpack.c.b16 %v871, %v863
    %v1064 = vpack.c.b16 %v872, %v864
    %v1065 = vpack.c.b16 %v873, %v865
    %v1066 = vpack.c.b16 %v874, %v866
    %v1067 = vpack.c.b16 %v875, %v867
    %v1068 = vpack.c.b16 %v876, %v868
    %v1069 = vpack.c.b16 %v885, %v877
    %v1070 = vpack.c.b16 %v886, %v878
    %v1071 = vpack.c.b16 %v887, %v879
    %v1072 = vpack.c.b16 %v888, %v880
    %v1073 = vpack.c.b16 %v889, %v881
    %v1074 = vpack.c.b16 %v890, %v882
    %v1075 = vpack.c.b16 %v891, %v883
    %v1076 = vpack.c.b16 %v892, %v884
    %v1077 = vpack.c.b16 %v901, %v893
    %v1078 = vpack.c.b16 %v902, %v894
    %v1079 = vpack.c.b16 %v903, %v895
    %v1080 = vpack.c.b16 %v904, %v896
    %v1081 = vpack.c.b16 %v905, %v897
    %v1082 = vpack.c.b16 %v906, %v898
    %v1083 = vpack.c.b16 %v907, %v899
    %v1084 = vpack.c.b16 %v908, %v900
    %v1085 = vpack.c.b16 %v917, %v909
    %v1086 = vpack.c.b16 %v918, %v910
    %v1087 = vpack.c.b16 %v919, %v911
    %v1088 = vpack.c.b16 %v920, %v912
    %v1089 = vpack.c.b16 %v921, %v913
    %v1090 = vpack.c.b16 %v922, %v914
    %v1091 = vpack.c.b16 %v923, %v915
    %v1092 = vpack.c.b16 %v924, %v916
    %v1093 = vpack.c.b16 %v933, %v925
    %v1094 = vpack.c.b16 %v934, %v926
    %v1095 = vpack.c.b16 %v935, %v927
    %v1096 = vpack.c.b16 %v936, %v928
    %v1097 = vpack.c.b16 %v937, %v929
    %v1098 = vpack.c.b16 %v938, %v930
    %v1099 = vpack.c.b16 %v939, %v931
    %v1100 = vpack.c.b16 %v940, %v932
    %v1101 = vpack.c.b16 %v949, %v941
    %v1102 = vpack.c.b16 %v950, %v942
    %v1103 = vpack.c.b16 %v951, %v943
    %v1104 = vpack.c.b16 %v952, %v944
    %v1105 = vpack.c.b16 %v953, %v945
    %v1106 = vpack.c.b16 %v954, %v946
    %v1107 = vpack.c.b16 %v955, %v947
    %v1108 = vpack.c.b16 %v956, %v948
    %v1109 = vpack.c.b16 %v965, %v957
    %v1110 = vpack.c.b16 %v966, %v958
    %v1111 = vpack.c.b16 %v967, %v959
    %v1112 = vpack.c.b16 %v968, %v960
    %v1113 = vpack.c.b16 %v969, %v961
    %v1114 = vpack.c.b16 %v970, %v962
    %v1115 = vpack.c.b16 %v971, %v963
    %v1116 = vpack.c.b16 %v972, %v964
    %v1117 = vpack.c.b16 %v981, %v973
    %v1118 = vpack.c.b16 %v982, %v974
    %v1119 = vpack.c.b16 %v983, %v975
    %v1120 = vpack.c.b16 %v984, %v976
    %v1121 = vpack.c.b16 %v985, %v977
    %v1122 = vpack.c.b16 %v986, %v978
    %v1123 = vpack.c.b16 %v987, %v979
    %v1124 = vpack.c.b16 %v988, %v980
    %v1125 = vpack.c.b16 %v997, %v989
    %v1126 = vpack.c.b16 %v998, %v990
    %v1127 = vpack.c.b16 %v999, %v991
    %v1128 = vpack.c.b16 %v1000, %v992
    %v1129 = vpack.c.b16 %v1001, %v993
    %v1130 = vpack.c.b16 %v1002, %v994
    %v1131 = vpack.c.b16 %v1003, %v995
    %v1132 = vpack.c.b16 %v1004, %v996
    %1261 = vmatprep.subr.bf16.mxu0 %v1006
    %1262 = vmatpush1.bf16.msra.mxu0 %v1005
    %1263 = vmatprep.subr.bf16.mxu0 %v1014
    %1264 = vmatpush1.bf16.msra.mxu0 %v1013
    %1265 = vmatprep.subr.bf16.mxu0 %v1022
    %1266 = vmatpush1.bf16.msra.mxu0 %v1021
    %1267 = vmatprep.subr.bf16.mxu0 %v1030
    %1268 = vmatpush1.bf16.msra.mxu0 %v1029
    %1269 = vmatprep.subr.bf16.mxu0 %v1038
    %1270 = vmatpush1.bf16.msra.mxu0 %v1037
    %1271 = vmatprep.subr.bf16.mxu0 %v1046
    %1272 = vmatpush1.bf16.msra.mxu0 %v1045
    %1273 = vmatprep.subr.bf16.mxu0 %v1054
    %1274 = vmatpush1.bf16.msra.mxu0 %v1053
    %1275 = vmatprep.subr.bf16.mxu0 %v1062
    %1276 = vmatpush1.bf16.msra.mxu0 %v1061
    %1277 = vmatprep.subr.bf16.mxu0 %v1070
    %1278 = vmatpush1.bf16.msra.mxu0 %v1069
    %1279 = vmatprep.subr.bf16.mxu0 %v1078
    %1280 = vmatpush1.bf16.msra.mxu0 %v1077
    %1281 = vmatprep.subr.bf16.mxu0 %v1086
    %1282 = vmatpush1.bf16.msra.mxu0 %v1085
    %1283 = vmatprep.subr.bf16.mxu0 %v1094
    %1284 = vmatpush1.bf16.msra.mxu0 %v1093
    %1285 = vmatprep.subr.bf16.mxu0 %v1102
    %1286 = vmatpush1.bf16.msra.mxu0 %v1101
    %1287 = vmatprep.subr.bf16.mxu0 %v1110
    %1288 = vmatpush1.bf16.msra.mxu0 %v1109
    %1289 = vmatprep.subr.bf16.mxu0 %v1118
    %1290 = vmatpush1.bf16.msra.mxu0 %v1117
    %1291 = vmatprep.subr.bf16.mxu0 %v1126
    %1292 = vmatpush1.bf16.msra.mxu0 %v1125
    %1293 = vmatprep.mubr.bf16.mxu0 %v618
    %1294 = vmatmul.mubr.bf16.gmra.mrb[0].mxu0 %v611
    %v1295 = vpop.f32.mrb[0].mxu0
    %v1296 = vadd.f32 %v559, %v1295
    %v1297 = vpop.f32.mrb[0].mxu0
    %v1298 = vadd.f32 %v563, %v1297
    %v1299 = vpop.f32.mrb[0].mxu0
    %v1300 = vpop.f32.mrb[0].mxu0
    %1301 = vdwg.mxu0
    %1302 = vmatprep.subr.bf16.mxu0 %v1008
    %1303 = vmatpush1.bf16.msra.mxu0 %v1007
    %1304 = vmatprep.subr.bf16.mxu0 %v1016
    %1305 = vmatpush1.bf16.msra.mxu0 %v1015
    %1306 = vmatprep.subr.bf16.mxu0 %v1024
    %1307 = vmatpush1.bf16.msra.mxu0 %v1023
    %1308 = vmatprep.subr.bf16.mxu0 %v1032
    %1309 = vmatpush1.bf16.msra.mxu0 %v1031
    %1310 = vmatprep.subr.bf16.mxu0 %v1040
    %1311 = vmatpush1.bf16.msra.mxu0 %v1039
    %1312 = vmatprep.subr.bf16.mxu0 %v1048
    %1313 = vmatpush1.bf16.msra.mxu0 %v1047
    %1314 = vmatprep.subr.bf16.mxu0 %v1056
    %1315 = vmatpush1.bf16.msra.mxu0 %v1055
    %1316 = vmatprep.subr.bf16.mxu0 %v1064
    %1317 = vmatpush1.bf16.msra.mxu0 %v1063
    %1318 = vmatprep.subr.bf16.mxu0 %v1072
    %1319 = vmatpush1.bf16.msra.mxu0 %v1071
    %1320 = vmatprep.subr.bf16.mxu0 %v1080
    %1321 = vmatpush1.bf16.msra.mxu0 %v1079
    %1322 = vmatprep.subr.bf16.mxu0 %v1088
    %1323 = vmatpush1.bf16.msra.mxu0 %v1087
    %1324 = vmatprep.subr.bf16.mxu0 %v1096
    %1325 = vmatpush1.bf16.msra.mxu0 %v1095
    %1326 = vmatprep.subr.bf16.mxu0 %v1104
    %1327 = vmatpush1.bf16.msra.mxu0 %v1103
    %1328 = vmatprep.subr.bf16.mxu0 %v1112
    %1329 = vmatpush1.bf16.msra.mxu0 %v1111
    %1330 = vmatprep.subr.bf16.mxu0 %v1120
    %1331 = vmatpush1.bf16.msra.mxu0 %v1119
    %1332 = vmatprep.subr.bf16.mxu0 %v1128
    %1333 = vmatpush1.bf16.msra.mxu0 %v1127
    %1334 = vmatprep.mubr.bf16.mxu0 %v618
    %1335 = vmatmul.mubr.bf16.gmra.mrb[0].mxu0 %v611
    %v1336 = vpop.f32.mrb[0].mxu0
    %v1337 = vadd.f32 %v567, %v1336
    %v1338 = vpop.f32.mrb[0].mxu0
    %v1339 = vadd.f32 %v571, %v1338
    %v1340 = vpop.f32.mrb[0].mxu0
    %v1341 = vpop.f32.mrb[0].mxu0
    %1342 = vdwg.mxu0
    %1343 = vmatprep.subr.bf16.mxu0 %v1010
    %1344 = vmatpush1.bf16.msra.mxu0 %v1009
    %1345 = vmatprep.subr.bf16.mxu0 %v1018
    %1346 = vmatpush1.bf16.msra.mxu0 %v1017
    %1347 = vmatprep.subr.bf16.mxu0 %v1026
    %1348 = vmatpush1.bf16.msra.mxu0 %v1025
    %1349 = vmatprep.subr.bf16.mxu0 %v1034
    %1350 = vmatpush1.bf16.msra.mxu0 %v1033
    %1351 = vmatprep.subr.bf16.mxu0 %v1042
    %1352 = vmatpush1.bf16.msra.mxu0 %v1041
    %1353 = vmatprep.subr.bf16.mxu0 %v1050
    %1354 = vmatpush1.bf16.msra.mxu0 %v1049
    %1355 = vmatprep.subr.bf16.mxu0 %v1058
    %1356 = vmatpush1.bf16.msra.mxu0 %v1057
    %1357 = vmatprep.subr.bf16.mxu0 %v1066
    %1358 = vmatpush1.bf16.msra.mxu0 %v1065
    %1359 = vmatprep.subr.bf16.mxu0 %v1074
    %1360 = vmatpush1.bf16.msra.mxu0 %v1073
    %1361 = vmatprep.subr.bf16.mxu0 %v1082
    %1362 = vmatpush1.bf16.msra.mxu0 %v1081
    %1363 = vmatprep.subr.bf16.mxu0 %v1090
    %1364 = vmatpush1.bf16.msra.mxu0 %v1089
    %1365 = vmatprep.subr.bf16.mxu0 %v1098
    %1366 = vmatpush1.bf16.msra.mxu0 %v1097
    %1367 = vmatprep.subr.bf16.mxu0 %v1106
    %1368 = vmatpush1.bf16.msra.mxu0 %v1105
    %1369 = vmatprep.subr.bf16.mxu0 %v1114
    %1370 = vmatpush1.bf16.msra.mxu0 %v1113
    %1371 = vmatprep.subr.bf16.mxu0 %v1122
    %1372 = vmatpush1.bf16.msra.mxu0 %v1121
    %1373 = vmatprep.subr.bf16.mxu0 %v1130
    %1374 = vmatpush1.bf16.msra.mxu0 %v1129
    %1375 = vmatprep.mubr.bf16.mxu0 %v618
    %1376 = vmatmul.mubr.bf16.gmra.mrb[0].mxu0 %v611
    %v1377 = vpop.f32.mrb[0].mxu0
    %v1378 = vadd.f32 %v575, %v1377
    %v1379 = vpop.f32.mrb[0].mxu0
    %v1380 = vadd.f32 %v579, %v1379
    %v1381 = vpop.f32.mrb[0].mxu0
    %v1382 = vpop.f32.mrb[0].mxu0
    %1383 = vdwg.mxu0
    %1384 = vmatprep.subr.bf16.mxu0 %v1012
    %1385 = vmatpush1.bf16.msra.mxu0 %v1011
    %1386 = vmatprep.subr.bf16.mxu0 %v1020
    %1387 = vmatpush1.bf16.msra.mxu0 %v1019
    %1388 = vmatprep.subr.bf16.mxu0 %v1028
    %1389 = vmatpush1.bf16.msra.mxu0 %v1027
    %1390 = vmatprep.subr.bf16.mxu0 %v1036
    %1391 = vmatpush1.bf16.msra.mxu0 %v1035
    %1392 = vmatprep.subr.bf16.mxu0 %v1044
    %1393 = vmatpush1.bf16.msra.mxu0 %v1043
    %1394 = vmatprep.subr.bf16.mxu0 %v1052
    %1395 = vmatpush1.bf16.msra.mxu0 %v1051
    %1396 = vmatprep.subr.bf16.mxu0 %v1060
    %1397 = vmatpush1.bf16.msra.mxu0 %v1059
    %1398 = vmatprep.subr.bf16.mxu0 %v1068
    %1399 = vmatpush1.bf16.msra.mxu0 %v1067
    %1400 = vmatprep.subr.bf16.mxu0 %v1076
    %1401 = vmatpush1.bf16.msra.mxu0 %v1075
    %1402 = vmatprep.subr.bf16.mxu0 %v1084
    %1403 = vmatpush1.bf16.msra.mxu0 %v1083
    %1404 = vmatprep.subr.bf16.mxu0 %v1092
    %1405 = vmatpush1.bf16.msra.mxu0 %v1091
    %1406 = vmatprep.subr.bf16.mxu0 %v1100
    %1407 = vmatpush1.bf16.msra.mxu0 %v1099
    %1408 = vmatprep.subr.bf16.mxu0 %v1108
    %1409 = vmatpush1.bf16.msra.mxu0 %v1107
    %1410 = vmatprep.subr.bf16.mxu0 %v1116
    %1411 = vmatpush1.bf16.msra.mxu0 %v1115
    %1412 = vmatprep.subr.bf16.mxu0 %v1124
    %1413 = vmatpush1.bf16.msra.mxu0 %v1123
    %1414 = vmatprep.subr.bf16.mxu0 %v1132
    %1415 = vmatpush1.bf16.msra.mxu0 %v1131
    %1416 = vmatprep.mubr.bf16.mxu0 %v618
    %1417 = vmatmul.mubr.bf16.gmra.mrb[0].mxu0 %v611
    %v1418 = vpop.f32.mrb[0].mxu0
    %v1419 = vadd.f32 %v583, %v1418
    %v1420 = vpop.f32.mrb[0].mxu0
    %v1421 = vadd.f32 %v587, %v1420
    %v1422 = vpop.f32.mrb[0].mxu0
    %v1423 = vpop.f32.mrb[0].mxu0
    %1424 = vdwg.mxu0
    %v1425 = vxor.u32 %v1296, 2147483648
    %v1426 = vxor.u32 %v1298, 2147483648
    %v1427 = vxor.u32 %v1337, 2147483648
    %v1428 = vxor.u32 %v1339, 2147483648
    %v1429 = vxor.u32 %v1378, 2147483648
    %v1430 = vxor.u32 %v1380, 2147483648
    %v1431 = vxor.u32 %v1419, 2147483648
    %v1432 = vxor.u32 %v1421, 2147483648
    %v1433 = vmul.f32 %v1425, 1.442695
    %v1434 = vpow.pop %v1433
    %v1435 = vmul.f32 %v1426, 1.442695
    %v1436 = vpow.pop %v1435
    %v1437 = vmul.f32 %v1427, 1.442695
    %v1438 = vpow.pop %v1437
    %v1439 = vmul.f32 %v1428, 1.442695
    %v1440 = vpow.pop %v1439
    %v1441 = vmul.f32 %v1429, 1.442695
    %v1442 = vpow.pop %v1441
    %v1443 = vmul.f32 %v1430, 1.442695
    %v1444 = vpow.pop %v1443
    %v1445 = vmul.f32 %v1431, 1.442695
    %v1446 = vpow.pop %v1445
    %v1447 = vmul.f32 %v1432, 1.442695
    %v1448 = vpow.pop %v1447
    %v1449 = vadd.f32 %v1434, 1.0
    %v1450 = vadd.f32 %v1436, 1.0
    %v1451 = vadd.f32 %v1438, 1.0
    %v1452 = vadd.f32 %v1440, 1.0
    %v1453 = vadd.f32 %v1442, 1.0
    %v1454 = vadd.f32 %v1444, 1.0
    %v1455 = vadd.f32 %v1446, 1.0
    %v1456 = vadd.f32 %v1448, 1.0
    %v1457 = vrcp.pop %v1449
    %v1458 = vmul.f32 1.0, %v1457
    %v1459 = vrcp.pop %v1450
    %v1460 = vmul.f32 1.0, %v1459
    %v1461 = vrcp.pop %v1451
    %v1462 = vmul.f32 1.0, %v1461
    %v1463 = vrcp.pop %v1452
    %v1464 = vmul.f32 1.0, %v1463
    %v1465 = vrcp.pop %v1453
    %v1466 = vmul.f32 1.0, %v1465
    %v1467 = vrcp.pop %v1454
    %v1468 = vmul.f32 1.0, %v1467
    %v1469 = vrcp.pop %v1455
    %v1470 = vmul.f32 1.0, %v1469
    %v1471 = vrcp.pop %v1456
    %v1472 = vmul.f32 1.0, %v1471
    %v1481 = vcombine.low %v1458, %v1460
    %v1482 = vcombine.low %v1462, %v1464
    %v1484 = vunpack.c.l.s4 1983009808
    %v1485 = vunpack.c.0.s8 %v1484
    %v1486 = vlaneseq
    %v1487 = vshrl.u32 %v1486, 7
    %v1488 = vsub.s32 %v1485, %v1487
    %v1489 = vrot.slane %v1481, %v1488
    %v1491 = vunpack.c.l.s4 1983009808
    %v1492 = vunpack.c.0.s8 %v1491
    %v1493 = vlaneseq
    %v1494 = vshrl.u32 %v1493, 7
    %v1495 = vsub.s32 %v1492, %v1494
    %v1496 = vrot.slane %v1482, %v1495
    %v1497 = vcombine.low %v1489, %v1496
    %v1498 = vcombine.low %v1466, %v1468
    %v1499 = vcombine.low %v1470, %v1472
    %v1501 = vunpack.c.l.s4 1983009808
    %v1502 = vunpack.c.0.s8 %v1501
    %v1503 = vlaneseq
    %v1504 = vshrl.u32 %v1503, 7
    %v1505 = vsub.s32 %v1502, %v1504
    %v1506 = vrot.slane %v1498, %v1505
    %v1508 = vunpack.c.l.s4 1983009808
    %v1509 = vunpack.c.0.s8 %v1508
    %v1510 = vlaneseq
    %v1511 = vshrl.u32 %v1510, 7
    %v1512 = vsub.s32 %v1509, %v1511
    %v1513 = vrot.slane %v1499, %v1512
    %v1514 = vcombine.low %v1506, %v1513
    %1517 = vst [vmem:[#allocation9] sm:$0xff] %v1497
    %1518 = vst [vmem:[#allocation9 + $0x8] sm:$0xff] %v1514
    // Predicated region
    $region34: #{tpu_custom_call.1} parent=1 // pred_check
      _
    $region35: #{tpu_custom_call.1} parent=1 // pred_check_branch
      %1520 = sbr.rel (0) target = $region37
    $region36: #{tpu_custom_call.1} parent=1 // pred_region
      %s1522 = ssub.s32 256, 256
      %1523 = vsyncadd [#allocation5], %s1522
      %s1525 = sshll.u32 [#allocation9], 4
      %s1526 = int_to_ptr.vmem [resolvable:$true] %s1525
      %1528 = dma.vmem_to_hbm [thread:$0]  %s1526, 256, %s5, [#allocation5]
    $region37: #{tpu_custom_call.1} parent=1 // pred_fallthru
      _
    // Predicated region
    $region38: #{tpu_custom_call.1} parent=1 // pred_check
      _
    $region39: #{tpu_custom_call.1} parent=1 // pred_check_branch
      %1530 = sbr.rel (0) target = $region41
    $region40: #{tpu_custom_call.1} parent=1 // pred_region
      %1531 = dma.done [#allocation5], 256
    $region41: #{tpu_custom_call.1} parent=1 // pred_fallthru
      _
    %1532 = vsyncpa [#allocation4], 1
    %1533 = vsyncpa [#allocation7], 1
    %1534 = vsyncpa [#allocation5], 1

</llo_original>
